<compile_context>
chip_gen: v6e
topology: v6e:2x2x1
jax: 0.10.0
libtpu: 0.0.40
codegen_flags: <defaults>
</compile_context>

<pallas_src>
import jax
import jax.numpy as jnp
from jax import lax
from jax.experimental import pallas as pl
from jax.experimental.pallas import tpu as pltpu

# Problem sizes (module: in_channels=4, out_channels=8; mid_channels defaults to out).
N, C_IN, H, W = 2, 4, 16, 16
C_OUT = 8
C_MID = C_OUT               # DoubleConv default
CP = 8                      # channels padded to 8 -> sublane-aligned im2col blocks
HP, WP = H // 2, W // 2     # spatial after MaxPool2d(2)
S = N * HP * WP             # 128 flattened (n, y, x) positions -> lane axis
K72 = 9 * CP                # im2col contraction size
K_PAD = 128                 # weight lane dim padded to a full vreg width
EPS = 1e-5

assert S == 128 and C_MID == C_OUT == CP


# ---------------------------------------------------------------------------
# One-time "module init" packing (hoisted out of the per-call forward path).
# ---------------------------------------------------------------------------
def _build_boundary_mask():
    """(K72, S) 0/1 f32 mask: row block t = (dy+1)*3 + (dx+1), column = lane.
    Zeroes out-of-image taps of the 3x3 'SAME' conv. Shared by both convs."""
    lane = jnp.arange(S, dtype=jnp.int32)
    xi = lane % WP
    yi = (lane // WP) % HP
    rows = []
    for dy in (-1, 0, 1):
        for dx in (-1, 0, 1):
            ok = jnp.ones((S,), dtype=bool)
            if dy == -1:
                ok = ok & (yi >= 1)
            elif dy == 1:
                ok = ok & (yi <= HP - 2)
            if dx == -1:
                ok = ok & (xi >= 1)
            elif dx == 1:
                ok = ok & (xi <= WP - 2)
            rows.append(jnp.broadcast_to(ok, (CP, S)))
    return jnp.concatenate(rows, axis=0).astype(jnp.float32)          # (72, 128)


def pack_params(params):
    """Done ONCE at module init; returns device-ready packed constants."""
    w1, b1, g1, be1, w2, b2, g2, be2 = params
    del b1, b2  # conv biases cancel exactly under train-mode (batch-stat) BatchNorm
    # PyTorch conv weights (Cout, Cin, kH, kW) -> im2col matrices,
    # column index = (kh*3 + kw)*CP + cin, in-channels zero-padded to CP,
    # lane dim zero-padded 72 -> 128 for unmasked weight loads.
    w1p = jnp.pad(w1, ((0, 0), (0, CP - C_IN), (0, 0), (0, 0)))
    w1m = jnp.transpose(w1p, (0, 2, 3, 1)).reshape(C_MID, K72)
    w2m = jnp.transpose(w2, (0, 2, 3, 1)).reshape(C_OUT, K72)
    w_pk = jnp.pad(jnp.stack([w1m, w2m], axis=0),
                   ((0, 0), (0, 0), (0, K_PAD - K72)))                # (2, 8, 128)
    bn_pk = jnp.stack([g1, be1, g2, be2], axis=0).reshape(4, C_MID, 1)  # (4, 8, 1)
    mask = _build_boundary_mask()                                      # (72, 128)
    return (jax.device_put(w_pk), jax.device_put(bn_pk), jax.device_put(mask))


# ---------------------------------------------------------------------------
# Kernel
# ---------------------------------------------------------------------------
def down_kernel(xp_ref, mask_ref, w_ref, bn_ref, o_ref):
    # ---- MaxPool2d(2): elementwise max over the four 2x2 phases ----
    pooled = jnp.maximum(jnp.maximum(xp_ref[0], xp_ref[1]),
                         jnp.maximum(xp_ref[2], xp_ref[3]))            # (CP, S)

    mask = mask_ref[...]                                               # (72, 128), reused twice
    zpad = jnp.zeros((K_PAD - K72, S), jnp.float32)
    inv_s = jnp.float32(1.0 / S)

    def conv_bn_relu(z, w, gamma, beta):
        # im2col via 9 lane rolls (XLU) + one 0/1 mask multiply (VPU)
        parts = []
        for dy in (-1, 0, 1):
            for dx in (-1, 0, 1):
                off = dy * WP + dx
                parts.append(z if off == 0 else pltpu.roll(z, (-off) % S, axis=1))
        patches = jnp.concatenate(
            [jnp.concatenate(parts, axis=0) * mask, zpad], axis=0)     # (128, 128)
        acc = jnp.dot(w, patches, preferred_element_type=jnp.float32)  # (C_OUT, S)
        # Train-mode BatchNorm: independent reductions, folded into one affine.
        s1 = jnp.sum(acc, axis=1, keepdims=True)                       # (C_OUT, 1)
        s2 = jnp.sum(acc * acc, axis=1, keepdims=True)                 # (C_OUT, 1)
        mean = s1 * inv_s
        var = s2 * inv_s - mean * mean                                 # biased variance
        scale = gamma * lax.rsqrt(var + EPS)
        shift = beta - mean * scale
        return jnp.maximum(acc * scale + shift, 0.0)

    h1 = conv_bn_relu(pooled, w_ref[0], bn_ref[0], bn_ref[1])          # (C_MID, S)
    h2 = conv_bn_relu(h1, w_ref[1], bn_ref[2], bn_ref[3])              # (C_OUT, S)
    o_ref[...] = h2                                                    # lane-dense (8, 128)


# ---------------------------------------------------------------------------
# Forward wrappers
# ---------------------------------------------------------------------------
def pack_input(x_nchw):
    """NCHW -> 2x2-phase, channel-major, spatial-minor packing:
    xp[p, c, n*64 + y*8 + x] = x[n, c, 2y+py, 2x+px],  p = 2*py + px."""
    x = x_nchw.astype(jnp.float32)
    xp = jnp.transpose(x.reshape(N, C_IN, HP, 2, WP, 2),
                       (3, 5, 1, 0, 2, 4)).reshape(4, C_IN, S)
    return jnp.pad(xp, ((0, 0), (0, CP - C_IN), (0, 0)))               # (4, CP, S)


def down_forward_packed(xp, packed):
    """Packed-layout contract: (4, CP, S) phases in -> (C_OUT, S) out."""
    w_pk, bn_pk, mask = packed
    vmem = pl.BlockSpec(memory_space=pltpu.MemorySpace.VMEM)
    return pl.pallas_call(
        down_kernel,
        out_shape=jax.ShapeDtypeStruct((C_OUT, S), jnp.float32),
        in_specs=[vmem, vmem, vmem, vmem],
        out_specs=vmem,
    )(xp, mask, w_pk, bn_pk)


def unpack_output(out):
    """(C_OUT, n*64 + y*8 + x) -> NCHW."""
    return jnp.transpose(out.reshape(C_OUT, N, HP, WP), (1, 0, 2, 3))


def down_forward(x_nchw, packed):
    """x_nchw: (N, C_IN, H, W) f32 -> (N, C_OUT, H//2, W//2) f32 (network-boundary API)."""
    return unpack_output(down_forward_packed(pack_input(x_nchw), packed))


# ---------------------------------------------------------------------------
# Pure-JAX reference of the PyTorch forward (biases included, proving the
# exact bias cancellation under train-mode BN).
# ---------------------------------------------------------------------------
def reference(x, params):
    w1, b1, g1, be1, w2, b2, g2, be2 = params
    n, c, h, w = x.shape
    xp = x.reshape(n, c, h // 2, 2, w // 2, 2).max(axis=(3, 5))

    def conv_bn_relu(z, wgt, b, g, be):
        y = lax.conv_general_dilated(z, wgt, (1, 1), 'SAME',
                                     dimension_numbers=('NCHW', 'OIHW', 'NCHW'))
        y = y + b[None, :, None, None]
        m = y.mean(axis=(0, 2, 3), keepdims=True)
        v = ((y - m) ** 2).mean(axis=(0, 2, 3), keepdims=True)
        y = (y - m) / jnp.sqrt(v + EPS) * g[None, :, None, None] + be[None, :, None, None]
        return jnp.maximum(y, 0.0)

    y = conv_bn_relu(xp, w1, b1, g1, be1)
    y = conv_bn_relu(y, w2, b2, g2, be2)
    return y


if __name__ == "__main__":
    key = jax.random.PRNGKey(0)
    ks = jax.random.split(key, 9)
    x = jax.random.normal(ks[0], (N, C_IN, H, W), jnp.float32)

    w1 = 0.1 * jax.random.normal(ks[1], (C_MID, C_IN, 3, 3), jnp.float32)
    b1 = 0.1 * jax.random.normal(ks[2], (C_MID,), jnp.float32)
    g1 = 1.0 + 0.1 * jax.random.normal(ks[3], (C_MID,), jnp.float32)
    be1 = 0.1 * jax.random.normal(ks[4], (C_MID,), jnp.float32)
    w2 = 0.1 * jax.random.normal(ks[5], (C_OUT, C_MID, 3, 3), jnp.float32)
    b2 = 0.1 * jax.random.normal(ks[6], (C_OUT,), jnp.float32)
    g2 = 1.0 + 0.1 * jax.random.normal(ks[7], (C_OUT,), jnp.float32)
    be2 = 0.1 * jax.random.normal(ks[8], (C_OUT,), jnp.float32)
    params = (w1, b1, g1, be1, w2, b2, g2, be2)

    packed = pack_params(params)                 # one-time module-init packing
    down = jax.jit(down_forward)                 # per-call path: relayout + kernel only

    out = jax.block_until_ready(down(x, packed))
    ref = reference(x, params)

    assert out.shape == (N, C_OUT, HP, WP), out.shape
    assert jnp.allclose(out, ref, rtol=1e-3, atol=1e-3), float(jnp.max(jnp.abs(out - ref)))
    print("KERNEL_OK")
</pallas_src>

<mosaic_0001>
module attributes {stable_mosaic.version = 11 : i64} {
  func.func @down_kernel(%arg0: memref<4x8x128xf32, #tpu.memory_space<vmem>>, %arg1: memref<72x128xf32, #tpu.memory_space<vmem>>, %arg2: memref<2x8x128xf32, #tpu.memory_space<vmem>>, %arg3: memref<4x8x1xf32, #tpu.memory_space<vmem>>, %arg4: memref<8x128xf32, #tpu.memory_space<vmem>>) attributes {dimension_semantics = [], scalar_prefetch = 0 : i64, scratch_operands = 0 : i64, tpu.core_type = #tpu.core_type<tc>} {
    %c0 = arith.constant 0 : index
    %c0_0 = arith.constant 0 : index
    %c0_1 = arith.constant 0 : index
    %0 = vector.load %arg0[%c0, %c0_0, %c0_1] : memref<4x8x128xf32, #tpu.memory_space<vmem>>, vector<1x8x128xf32>
    %1 = vector.shape_cast %0 : vector<1x8x128xf32> to vector<8x128xf32>
    %c1 = arith.constant 1 : index
    %c0_2 = arith.constant 0 : index
    %c0_3 = arith.constant 0 : index
    %2 = vector.load %arg0[%c1, %c0_2, %c0_3] : memref<4x8x128xf32, #tpu.memory_space<vmem>>, vector<1x8x128xf32>
    %3 = vector.shape_cast %2 : vector<1x8x128xf32> to vector<8x128xf32>
    %4 = arith.maximumf %1, %3 : vector<8x128xf32>
    %c2 = arith.constant 2 : index
    %c0_4 = arith.constant 0 : index
    %c0_5 = arith.constant 0 : index
    %5 = vector.load %arg0[%c2, %c0_4, %c0_5] : memref<4x8x128xf32, #tpu.memory_space<vmem>>, vector<1x8x128xf32>
    %6 = vector.shape_cast %5 : vector<1x8x128xf32> to vector<8x128xf32>
    %c3 = arith.constant 3 : index
    %c0_6 = arith.constant 0 : index
    %c0_7 = arith.constant 0 : index
    %7 = vector.load %arg0[%c3, %c0_6, %c0_7] : memref<4x8x128xf32, #tpu.memory_space<vmem>>, vector<1x8x128xf32>
    %8 = vector.shape_cast %7 : vector<1x8x128xf32> to vector<8x128xf32>
    %9 = arith.maximumf %6, %8 : vector<8x128xf32>
    %10 = arith.maximumf %4, %9 : vector<8x128xf32>
    %c0_8 = arith.constant 0 : index
    %c0_9 = arith.constant 0 : index
    %11 = vector.load %arg1[%c0_8, %c0_9] : memref<72x128xf32, #tpu.memory_space<vmem>>, vector<72x128xf32>
    %cst = arith.constant 0.000000e+00 : f32
    %12 = vector.broadcast %cst : f32 to vector<56x128xf32>
    %c0_10 = arith.constant 0 : index
    %c0_11 = arith.constant 0 : index
    %c0_12 = arith.constant 0 : index
    %13 = vector.load %arg2[%c0_10, %c0_11, %c0_12] : memref<2x8x128xf32, #tpu.memory_space<vmem>>, vector<1x8x128xf32>
    %14 = vector.shape_cast %13 : vector<1x8x128xf32> to vector<8x128xf32>
    %c0_13 = arith.constant 0 : index
    %c0_14 = arith.constant 0 : index
    %c0_15 = arith.constant 0 : index
    %15 = vector.load %arg3[%c0_13, %c0_14, %c0_15] : memref<4x8x1xf32, #tpu.memory_space<vmem>>, vector<1x8x1xf32>
    %16 = vector.shape_cast %15 : vector<1x8x1xf32> to vector<8x1xf32>
    %c1_16 = arith.constant 1 : index
    %c0_17 = arith.constant 0 : index
    %c0_18 = arith.constant 0 : index
    %17 = vector.load %arg3[%c1_16, %c0_17, %c0_18] : memref<4x8x1xf32, #tpu.memory_space<vmem>>, vector<1x8x1xf32>
    %18 = vector.shape_cast %17 : vector<1x8x1xf32> to vector<8x1xf32>
    %c9_i32 = arith.constant 9 : i32
    %19 = tpu.dynamic_rotate %10 by %c9_i32 dim 1 : vector<8x128xf32>, i32 -> vector<8x128xf32>
    %c8_i32 = arith.constant 8 : i32
    %20 = tpu.dynamic_rotate %10 by %c8_i32 dim 1 : vector<8x128xf32>, i32 -> vector<8x128xf32>
    %c7_i32 = arith.constant 7 : i32
    %21 = tpu.dynamic_rotate %10 by %c7_i32 dim 1 : vector<8x128xf32>, i32 -> vector<8x128xf32>
    %c1_i32 = arith.constant 1 : i32
    %22 = tpu.dynamic_rotate %10 by %c1_i32 dim 1 : vector<8x128xf32>, i32 -> vector<8x128xf32>
    %c127_i32 = arith.constant 127 : i32
    %23 = tpu.dynamic_rotate %10 by %c127_i32 dim 1 : vector<8x128xf32>, i32 -> vector<8x128xf32>
    %c121_i32 = arith.constant 121 : i32
    %24 = tpu.dynamic_rotate %10 by %c121_i32 dim 1 : vector<8x128xf32>, i32 -> vector<8x128xf32>
    %c120_i32 = arith.constant 120 : i32
    %25 = tpu.dynamic_rotate %10 by %c120_i32 dim 1 : vector<8x128xf32>, i32 -> vector<8x128xf32>
    %c119_i32 = arith.constant 119 : i32
    %26 = tpu.dynamic_rotate %10 by %c119_i32 dim 1 : vector<8x128xf32>, i32 -> vector<8x128xf32>
    %27 = tpu.concatenate %19, %20, %21, %22, %10, %23, %24, %25, %26 in 0 : vector<8x128xf32>, vector<8x128xf32>, vector<8x128xf32>, vector<8x128xf32>, vector<8x128xf32>, vector<8x128xf32>, vector<8x128xf32>, vector<8x128xf32>, vector<8x128xf32> -> vector<72x128xf32>
    %28 = arith.mulf %27, %11 : vector<72x128xf32>
    %29 = tpu.concatenate %28, %12 in 0 : vector<72x128xf32>, vector<56x128xf32> -> vector<128x128xf32>
    %cst_19 = arith.constant dense<0.000000e+00> : vector<8x128xf32>
    %30 = tpu.matmul %14, %29, %cst_19 {dimension_numbers = #tpu.dot_dimension_numbers<[1], [0], [0], [1], [0, 0, 1, 1], [], []>} : vector<8x128xf32>, vector<128x128xf32>, vector<8x128xf32> -> vector<8x128xf32>
    %cst_20 = arith.constant dense<0.000000e+00> : vector<8xf32>
    %31 = vector.multi_reduction <add>, %30, %cst_20 [1] : vector<8x128xf32> to vector<8xf32>
    %32 = vector.shape_cast %31 : vector<8xf32> to vector<8x1xf32>
    %33 = arith.mulf %30, %30 : vector<8x128xf32>
    %cst_21 = arith.constant dense<0.000000e+00> : vector<8xf32>
    %34 = vector.multi_reduction <add>, %33, %cst_21 [1] : vector<8x128xf32> to vector<8xf32>
    %35 = vector.shape_cast %34 : vector<8xf32> to vector<8x1xf32>
    %cst_22 = arith.constant 7.812500e-03 : f32
    %36 = vector.broadcast %cst_22 : f32 to vector<8x1xf32>
    %37 = arith.mulf %32, %36 : vector<8x1xf32>
    %cst_23 = arith.constant 7.812500e-03 : f32
    %38 = vector.broadcast %cst_23 : f32 to vector<8x1xf32>
    %39 = arith.mulf %35, %38 : vector<8x1xf32>
    %40 = arith.mulf %37, %37 : vector<8x1xf32>
    %41 = arith.subf %39, %40 : vector<8x1xf32>
    %cst_24 = arith.constant 9.99999974E-6 : f32
    %42 = vector.broadcast %cst_24 : f32 to vector<8x1xf32>
    %43 = arith.addf %41, %42 : vector<8x1xf32>
    %44 = math.rsqrt %43 : vector<8x1xf32>
    %45 = arith.mulf %16, %44 : vector<8x1xf32>
    %46 = arith.mulf %37, %45 : vector<8x1xf32>
    %47 = arith.subf %18, %46 : vector<8x1xf32>
    %48 = vector.broadcast %45 : vector<8x1xf32> to vector<8x128xf32>
    %49 = arith.mulf %30, %48 : vector<8x128xf32>
    %50 = vector.broadcast %47 : vector<8x1xf32> to vector<8x128xf32>
    %51 = arith.addf %49, %50 : vector<8x128xf32>
    %cst_25 = arith.constant 0.000000e+00 : f32
    %52 = vector.broadcast %cst_25 : f32 to vector<8x128xf32>
    %53 = arith.maximumf %51, %52 : vector<8x128xf32>
    %c1_26 = arith.constant 1 : index
    %c0_27 = arith.constant 0 : index
    %c0_28 = arith.constant 0 : index
    %54 = vector.load %arg2[%c1_26, %c0_27, %c0_28] : memref<2x8x128xf32, #tpu.memory_space<vmem>>, vector<1x8x128xf32>
    %55 = vector.shape_cast %54 : vector<1x8x128xf32> to vector<8x128xf32>
    %c2_29 = arith.constant 2 : index
    %c0_30 = arith.constant 0 : index
    %c0_31 = arith.constant 0 : index
    %56 = vector.load %arg3[%c2_29, %c0_30, %c0_31] : memref<4x8x1xf32, #tpu.memory_space<vmem>>, vector<1x8x1xf32>
    %57 = vector.shape_cast %56 : vector<1x8x1xf32> to vector<8x1xf32>
    %c3_32 = arith.constant 3 : index
    %c0_33 = arith.constant 0 : index
    %c0_34 = arith.constant 0 : index
    %58 = vector.load %arg3[%c3_32, %c0_33, %c0_34] : memref<4x8x1xf32, #tpu.memory_space<vmem>>, vector<1x8x1xf32>
    %59 = vector.shape_cast %58 : vector<1x8x1xf32> to vector<8x1xf32>
    %c9_i32_35 = arith.constant 9 : i32
    %60 = tpu.dynamic_rotate %53 by %c9_i32_35 dim 1 : vector<8x128xf32>, i32 -> vector<8x128xf32>
    %c8_i32_36 = arith.constant 8 : i32
    %61 = tpu.dynamic_rotate %53 by %c8_i32_36 dim 1 : vector<8x128xf32>, i32 -> vector<8x128xf32>
    %c7_i32_37 = arith.constant 7 : i32
    %62 = tpu.dynamic_rotate %53 by %c7_i32_37 dim 1 : vector<8x128xf32>, i32 -> vector<8x128xf32>
    %c1_i32_38 = arith.constant 1 : i32
    %63 = tpu.dynamic_rotate %53 by %c1_i32_38 dim 1 : vector<8x128xf32>, i32 -> vector<8x128xf32>
    %c127_i32_39 = arith.constant 127 : i32
    %64 = tpu.dynamic_rotate %53 by %c127_i32_39 dim 1 : vector<8x128xf32>, i32 -> vector<8x128xf32>
    %c121_i32_40 = arith.constant 121 : i32
    %65 = tpu.dynamic_rotate %53 by %c121_i32_40 dim 1 : vector<8x128xf32>, i32 -> vector<8x128xf32>
    %c120_i32_41 = arith.constant 120 : i32
    %66 = tpu.dynamic_rotate %53 by %c120_i32_41 dim 1 : vector<8x128xf32>, i32 -> vector<8x128xf32>
    %c119_i32_42 = arith.constant 119 : i32
    %67 = tpu.dynamic_rotate %53 by %c119_i32_42 dim 1 : vector<8x128xf32>, i32 -> vector<8x128xf32>
    %68 = tpu.concatenate %60, %61, %62, %63, %53, %64, %65, %66, %67 in 0 : vector<8x128xf32>, vector<8x128xf32>, vector<8x128xf32>, vector<8x128xf32>, vector<8x128xf32>, vector<8x128xf32>, vector<8x128xf32>, vector<8x128xf32>, vector<8x128xf32> -> vector<72x128xf32>
    %69 = arith.mulf %68, %11 : vector<72x128xf32>
    %70 = tpu.concatenate %69, %12 in 0 : vector<72x128xf32>, vector<56x128xf32> -> vector<128x128xf32>
    %cst_43 = arith.constant dense<0.000000e+00> : vector<8x128xf32>
    %71 = tpu.matmul %55, %70, %cst_43 {dimension_numbers = #tpu.dot_dimension_numbers<[1], [0], [0], [1], [0, 0, 1, 1], [], []>} : vector<8x128xf32>, vector<128x128xf32>, vector<8x128xf32> -> vector<8x128xf32>
    %cst_44 = arith.constant dense<0.000000e+00> : vector<8xf32>
    %72 = vector.multi_reduction <add>, %71, %cst_44 [1] : vector<8x128xf32> to vector<8xf32>
    %73 = vector.shape_cast %72 : vector<8xf32> to vector<8x1xf32>
    %74 = arith.mulf %71, %71 : vector<8x128xf32>
    %cst_45 = arith.constant dense<0.000000e+00> : vector<8xf32>
    %75 = vector.multi_reduction <add>, %74, %cst_45 [1] : vector<8x128xf32> to vector<8xf32>
    %76 = vector.shape_cast %75 : vector<8xf32> to vector<8x1xf32>
    %cst_46 = arith.constant 7.812500e-03 : f32
    %77 = vector.broadcast %cst_46 : f32 to vector<8x1xf32>
    %78 = arith.mulf %73, %77 : vector<8x1xf32>
    %cst_47 = arith.constant 7.812500e-03 : f32
    %79 = vector.broadcast %cst_47 : f32 to vector<8x1xf32>
    %80 = arith.mulf %76, %79 : vector<8x1xf32>
    %81 = arith.mulf %78, %78 : vector<8x1xf32>
    %82 = arith.subf %80, %81 : vector<8x1xf32>
    %cst_48 = arith.constant 9.99999974E-6 : f32
    %83 = vector.broadcast %cst_48 : f32 to vector<8x1xf32>
    %84 = arith.addf %82, %83 : vector<8x1xf32>
    %85 = math.rsqrt %84 : vector<8x1xf32>
    %86 = arith.mulf %57, %85 : vector<8x1xf32>
    %87 = arith.mulf %78, %86 : vector<8x1xf32>
    %88 = arith.subf %59, %87 : vector<8x1xf32>
    %89 = vector.broadcast %86 : vector<8x1xf32> to vector<8x128xf32>
    %90 = arith.mulf %71, %89 : vector<8x128xf32>
    %91 = vector.broadcast %88 : vector<8x1xf32> to vector<8x128xf32>
    %92 = arith.addf %90, %91 : vector<8x128xf32>
    %cst_49 = arith.constant 0.000000e+00 : f32
    %93 = vector.broadcast %cst_49 : f32 to vector<8x128xf32>
    %94 = arith.maximumf %92, %93 : vector<8x128xf32>
    %c0_50 = arith.constant 0 : index
    %c0_51 = arith.constant 0 : index
    %95 = vector.load %arg4[%c0_50, %c0_51] : memref<8x128xf32, #tpu.memory_space<vmem>>, vector<8x128xf32>
    tpu.vector_store %arg4[%c0_50, %c0_51], %94 {strides = array<i32>} : memref<8x128xf32, #tpu.memory_space<vmem>>, vector<8x128xf32>,
    return
  }
}

</mosaic_0001>

<llo_original>
// kernel: down_forward.1
$region0: #{down_forward.1}
  #allocation0 [shape = 'u32[]', space=smem, size = 0x4, offset = 0x4, fixed_abs, tag = 'smem constant byte address 0x4 - core index']
  #allocation1 [shape = 'u32[144,128]{1,0:T(1,128)}', space=vmem, size = 0x12000, scoped, tag = 'internal scratch']
  %s0 = inlined_call_operand.vmem [shape: f32[4,8,128], index: 0, kind: input, shape index: {}]
  %s1 = inlined_call_operand.vmem [shape: f32[72,128], index: 1, kind: input, shape index: {}]
  %s2 = inlined_call_operand.vmem [shape: f32[2,8,128], index: 2, kind: input, shape index: {}]
  %s3 = inlined_call_operand.vmem [shape: f32[4,8,1], index: 3, kind: input, shape index: {}]
  %s4 = inlined_call_operand.vmem [shape: f32[8,128], index: 4, kind: output, shape index: {}]
  %s5 = sld [smem:[#allocation0]]
  $region26: #{down_forward.1} parent=0
    _
  %s7 = ssub.s32 1, %s5
  %s8 = scalar_select 0, %s7, %s5
  // Predicated region
  $region2: #{down_forward.1} parent=0 // pred_check
    _
  $region3: #{down_forward.1} parent=0 // pred_check_branch
    %10 = sbr.rel (0) target = $region5
  $region4: #{down_forward.1} parent=0 // pred_region
    _
  $region5: #{down_forward.1} parent=0 // pred_fallthru
    _
  // Predicated region
  $region6: #{down_forward.1} parent=0 // pred_check
    _
  $region7: #{down_forward.1} parent=0 // pred_check_branch
    %12 = sbr.rel (0) target = $region9
  $region8: #{down_forward.1} parent=0 // pred_region
    _
  $region9: #{down_forward.1} parent=0 // pred_fallthru
    _
  // Predicated region
  $region10: #{down_forward.1} parent=0 // pred_check
    _
  $region11: #{down_forward.1} parent=0 // pred_check_branch
    %14 = sbr.rel (0) target = $region13
  $region12: #{down_forward.1} parent=0 // pred_region
    _
  $region13: #{down_forward.1} parent=0 // pred_fallthru
    _
  // Predicated region
  $region14: #{down_forward.1} parent=0 // pred_check
    _
  $region15: #{down_forward.1} parent=0 // pred_check_branch
    %16 = sbr.rel (0) target = $region17
  $region16: #{down_forward.1} parent=0 // pred_region
    _
  $region17: #{down_forward.1} parent=0 // pred_fallthru
    _
  %v17 = vld [vmem:[%s0] sm:$0xff]
  %s18 = scalar_lea.vmem %s0, 8
  %v19 = vld [vmem:[%s18] sm:$0xff]
  %v20 = vmax.f32 %v17, %v19
  %s21 = scalar_lea.vmem %s0, 16
  %v22 = vld [vmem:[%s21] sm:$0xff]
  %s23 = scalar_lea.vmem %s0, 24
  %v24 = vld [vmem:[%s23] sm:$0xff]
  %v25 = vmax.f32 %v22, %v24
  %v26 = vmax.f32 %v20, %v25
  %v27 = vld [vmem:[%s1] sm:$0xff]
  %v28 = vld [vmem:[%s1 + $0x8] sm:$0xff]
  %v29 = vld [vmem:[%s1 + $0x10] sm:$0xff]
  %v30 = vld [vmem:[%s1 + $0x18] sm:$0xff]
  %v31 = vld [vmem:[%s1 + $0x20] sm:$0xff]
  %v32 = vld [vmem:[%s1 + $0x28] sm:$0xff]
  %v33 = vld [vmem:[%s1 + $0x30] sm:$0xff]
  %v34 = vld [vmem:[%s1 + $0x38] sm:$0xff]
  %v35 = vld [vmem:[%s1 + $0x40] sm:$0xff]
  %v36 = vld [vmem:[%s2] sm:$0xff]
  %v37 = vld [vmem:[%s3] sm:$0xff]
  %s38 = scalar_lea.vmem %s3, 8
  %v39 = vld [vmem:[%s38] sm:$0xff]
  %40 = vrot.lane.b32.xlu0 %v26, 9
  %v41 = vpop.permute.xlu0 %40
  %42 = vrot.lane.b32.xlu0 %v26, 8
  %v43 = vpop.permute.xlu0 %42
  %44 = vrot.lane.b32.xlu0 %v26, 7
  %v45 = vpop.permute.xlu0 %44
  %46 = vrot.lane.b32.xlu0 %v26, 1
  %v47 = vpop.permute.xlu0 %46
  %48 = vrot.lane.b32.xlu0 %v26, 127
  %v49 = vpop.permute.xlu0 %48
  %50 = vrot.lane.b32.xlu0 %v26, 121
  %v51 = vpop.permute.xlu0 %50
  %52 = vrot.lane.b32.xlu0 %v26, 120
  %v53 = vpop.permute.xlu0 %52
  %54 = vrot.lane.b32.xlu0 %v26, 119
  %v55 = vpop.permute.xlu0 %54
  %v56 = vmul.f32 %v41, %v27
  %v57 = vmul.f32 %v43, %v28
  %v58 = vmul.f32 %v45, %v29
  %v59 = vmul.f32 %v47, %v30
  %v60 = vmul.f32 %v26, %v31
  %v61 = vmul.f32 %v49, %v32
  %v62 = vmul.f32 %v51, %v33
  %v63 = vmul.f32 %v53, %v34
  %v64 = vmul.f32 %v55, %v35
  %65 = vmatprep.subr.mxu0 0.0
  %66 = vmatpush1.msra.mxu0 0.0
  %67 = vmatprep.subr.mxu0 0.0
  %68 = vmatpush1.msra.mxu0 0.0
  %69 = vmatprep.subr.mxu0 0.0
  %70 = vmatpush1.msra.mxu0 0.0
  %71 = vmatprep.subr.mxu0 0.0
  %72 = vmatpush1.msra.mxu0 0.0
  %73 = vmatprep.subr.mxu0 0.0
  %74 = vmatpush1.msra.mxu0 0.0
  %75 = vmatprep.subr.mxu0 0.0
  %76 = vmatpush1.msra.mxu0 0.0
  %77 = vmatprep.subr.mxu0 0.0
  %78 = vmatpush1.msra.mxu0 0.0
  %79 = vmatprep.subr.mxu0 0.0
  %80 = vmatpush1.msra.mxu0 %v64
  %81 = vmatprep.subr.mxu0 0.0
  %82 = vmatpush1.msra.mxu0 %v63
  %83 = vmatprep.subr.mxu0 0.0
  %84 = vmatpush1.msra.mxu0 %v62
  %85 = vmatprep.subr.mxu0 0.0
  %86 = vmatpush1.msra.mxu0 %v61
  %87 = vmatprep.subr.mxu0 0.0
  %88 = vmatpush1.msra.mxu0 %v60
  %89 = vmatprep.subr.mxu0 0.0
  %90 = vmatpush1.msra.mxu0 %v59
  %91 = vmatprep.subr.mxu0 0.0
  %92 = vmatpush1.msra.mxu0 %v58
  %93 = vmatprep.subr.mxu0 0.0
  %94 = vmatpush1.msra.mxu0 %v57
  %95 = vmatprep.subr.mxu0 0.0
  %96 = vmatpush1.msra.mxu0 %v56
  %97 = vmatprep.subr.mxu0 0.0
  %98 = vmatpush2.msra.mxu0 0.0
  %99 = vmatprep.subr.mxu0 0.0
  %100 = vmatpush2.msra.mxu0 0.0
  %101 = vmatprep.subr.mxu0 0.0
  %102 = vmatpush2.msra.mxu0 0.0
  %103 = vmatprep.subr.mxu0 0.0
  %104 = vmatpush2.msra.mxu0 0.0
  %105 = vmatprep.subr.mxu0 0.0
  %106 = vmatpush2.msra.mxu0 0.0
  %107 = vmatprep.subr.mxu0 0.0
  %108 = vmatpush2.msra.mxu0 0.0
  %109 = vmatprep.subr.mxu0 0.0
  %110 = vmatpush2.msra.mxu0 0.0
  %111 = vmatprep.subr.mxu0 0.0
  %112 = vmatpush2.msra.mxu0 0.0
  %113 = vmatprep.subr.mxu0 0.0
  %114 = vmatpush2.msra.mxu0 0.0
  %115 = vmatprep.subr.mxu0 0.0
  %116 = vmatpush2.msra.mxu0 0.0
  %117 = vmatprep.subr.mxu0 0.0
  %118 = vmatpush2.msra.mxu0 0.0
  %119 = vmatprep.subr.mxu0 0.0
  %120 = vmatpush2.msra.mxu0 0.0
  %121 = vmatprep.subr.mxu0 0.0
  %122 = vmatpush2.msra.mxu0 0.0
  %123 = vmatprep.subr.mxu0 0.0
  %124 = vmatpush2.msra.mxu0 0.0
  %125 = vmatprep.subr.mxu0 0.0
  %126 = vmatpush2.msra.mxu0 0.0
  %127 = vmatprep.subr.mxu0 0.0
  %128 = vmatpush2.msra.mxu0 0.0
  %129 = vmatprep.mubr.f32.mxu0 0.0
  %130 = vmatmul.mubr.f32.gmra.mxu0 %v36
  %v131 = vpop.f32.mrf.mxu0
  %v132 = vadd.f32 0.0, %v131
  %v133 = vpop.f32.mrf.mxu0
  %134 = vdwg.mxu0
  %135 = vadd.xlane.f32.xlu0 %v132
  %v136 = vpop.xlane.xlu0 %135
  %v137 = vmul.f32 %v132, %v132
  %138 = vadd.xlane.f32.xlu0 %v137
  %v139 = vpop.xlane.xlu0 %138
  %v140 = vmul.f32 %v136, 0.0078125
  %v141 = vmul.f32 %v139, 0.0078125
  %v142 = vmul.f32 %v140, %v140
  %v143 = vsub.f32 %v141, %v142
  %v144 = vadd.f32 %v143, 1e-05
  %v145 = vrsqrt.pop %v144
  %v146 = vmul.f32 %v37, %v145
  %v147 = vmul.f32 %v140, %v146
  %v148 = vsub.f32 %v39, %v147
  %150 = vset.pattern.permute.xlu0 0
  %151 = vperm.xlu0 %150, %v146
  %v152 = vpop.permute.xlu0 %151
  %v154 = vmul.f32 %v132, %v152
  %156 = vset.pattern.permute.xlu0 0
  %157 = vperm.xlu0 %156, %v148
  %v158 = vpop.permute.xlu0 %157
  %v160 = vadd.f32 %v154, %v158
  %v161 = vmax.f32 %v160, 0.0
  %s162 = scalar_lea.vmem %s2, 8
  %v163 = vld [vmem:[%s162] sm:$0xff]
  %s164 = scalar_lea.vmem %s3, 16
  %v165 = vld [vmem:[%s164] sm:$0xff]
  %s166 = scalar_lea.vmem %s3, 24
  %v167 = vld [vmem:[%s166] sm:$0xff]
  %168 = vrot.lane.b32.xlu0 %v161, 9
  %v169 = vpop.permute.xlu0 %168
  %170 = vrot.lane.b32.xlu0 %v161, 8
  %v171 = vpop.permute.xlu0 %170
  %172 = vrot.lane.b32.xlu0 %v161, 7
  %v173 = vpop.permute.xlu0 %172
  %174 = vrot.lane.b32.xlu0 %v161, 1
  %v175 = vpop.permute.xlu0 %174
  %176 = vrot.lane.b32.xlu0 %v161, 127
  %v177 = vpop.permute.xlu0 %176
  %178 = vrot.lane.b32.xlu0 %v161, 121
  %v179 = vpop.permute.xlu0 %178
  %180 = vrot.lane.b32.xlu0 %v161, 120
  %v181 = vpop.permute.xlu0 %180
  %182 = vrot.lane.b32.xlu0 %v161, 119
  %v183 = vpop.permute.xlu0 %182
  %v184 = vmul.f32 %v169, %v27
  %v185 = vmul.f32 %v171, %v28
  %v186 = vmul.f32 %v173, %v29
  %v187 = vmul.f32 %v175, %v30
  %v188 = vmul.f32 %v161, %v31
  %v189 = vmul.f32 %v177, %v32
  %v190 = vmul.f32 %v179, %v33
  %v191 = vmul.f32 %v181, %v34
  %v192 = vmul.f32 %v183, %v35
  %193 = vmatprep.subr.mxu0 0.0
  %194 = vmatpush1.msra.mxu0 0.0
  %195 = vmatprep.subr.mxu0 0.0
  %196 = vmatpush1.msra.mxu0 0.0
  %197 = vmatprep.subr.mxu0 0.0
  %198 = vmatpush1.msra.mxu0 0.0
  %199 = vmatprep.subr.mxu0 0.0
  %200 = vmatpush1.msra.mxu0 0.0
  %201 = vmatprep.subr.mxu0 0.0
  %202 = vmatpush1.msra.mxu0 0.0
  %203 = vmatprep.subr.mxu0 0.0
  %204 = vmatpush1.msra.mxu0 0.0
  %205 = vmatprep.subr.mxu0 0.0
  %206 = vmatpush1.msra.mxu0 0.0
  %207 = vmatprep.subr.mxu0 0.0
  %208 = vmatpush1.msra.mxu0 %v192
  %209 = vmatprep.subr.mxu0 0.0
  %210 = vmatpush1.msra.mxu0 %v191
  %211 = vmatprep.subr.mxu0 0.0
  %212 = vmatpush1.msra.mxu0 %v190
  %213 = vmatprep.subr.mxu0 0.0
  %214 = vmatpush1.msra.mxu0 %v189
  %215 = vmatprep.subr.mxu0 0.0
  %216 = vmatpush1.msra.mxu0 %v188
  %217 = vmatprep.subr.mxu0 0.0
  %218 = vmatpush1.msra.mxu0 %v187
  %219 = vmatprep.subr.mxu0 0.0
  %220 = vmatpush1.msra.mxu0 %v186
  %221 = vmatprep.subr.mxu0 0.0
  %222 = vmatpush1.msra.mxu0 %v185
  %223 = vmatprep.subr.mxu0 0.0
  %224 = vmatpush1.msra.mxu0 %v184
  %225 = vmatprep.subr.mxu0 0.0
  %226 = vmatpush2.msra.mxu0 0.0
  %227 = vmatprep.subr.mxu0 0.0
  %228 = vmatpush2.msra.mxu0 0.0
  %229 = vmatprep.subr.mxu0 0.0
  %230 = vmatpush2.msra.mxu0 0.0
  %231 = vmatprep.subr.mxu0 0.0
  %232 = vmatpush2.msra.mxu0 0.0
  %233 = vmatprep.subr.mxu0 0.0
  %234 = vmatpush2.msra.mxu0 0.0
  %235 = vmatprep.subr.mxu0 0.0
  %236 = vmatpush2.msra.mxu0 0.0
  %237 = vmatprep.subr.mxu0 0.0
  %238 = vmatpush2.msra.mxu0 0.0
  %239 = vmatprep.subr.mxu0 0.0
  %240 = vmatpush2.msra.mxu0 0.0
  %241 = vmatprep.subr.mxu0 0.0
  %242 = vmatpush2.msra.mxu0 0.0
  %243 = vmatprep.subr.mxu0 0.0
  %244 = vmatpush2.msra.mxu0 0.0
  %245 = vmatprep.subr.mxu0 0.0
  %246 = vmatpush2.msra.mxu0 0.0
  %247 = vmatprep.subr.mxu0 0.0
  %248 = vmatpush2.msra.mxu0 0.0
  %249 = vmatprep.subr.mxu0 0.0
  %250 = vmatpush2.msra.mxu0 0.0
  %251 = vmatprep.subr.mxu0 0.0
  %252 = vmatpush2.msra.mxu0 0.0
  %253 = vmatprep.subr.mxu0 0.0
  %254 = vmatpush2.msra.mxu0 0.0
  %255 = vmatprep.subr.mxu0 0.0
  %256 = vmatpush2.msra.mxu0 0.0
  %257 = vmatprep.mubr.f32.mxu0 0.0
  %258 = vmatmul.mubr.f32.gmra.mxu0 %v163
  %v259 = vpop.f32.mrf.mxu0
  %v260 = vadd.f32 0.0, %v259
  %v261 = vpop.f32.mrf.mxu0
  %262 = vdwg.mxu0
  %263 = vadd.xlane.f32.xlu0 %v260
  %v264 = vpop.xlane.xlu0 %263
  %v265 = vmul.f32 %v260, %v260
  %266 = vadd.xlane.f32.xlu0 %v265
  %v267 = vpop.xlane.xlu0 %266
  %v268 = vmul.f32 %v264, 0.0078125
  %v269 = vmul.f32 %v267, 0.0078125
  %v270 = vmul.f32 %v268, %v268
  %v271 = vsub.f32 %v269, %v270
  %v272 = vadd.f32 %v271, 1e-05
  %v273 = vrsqrt.pop %v272
  %v274 = vmul.f32 %v165, %v273
  %v275 = vmul.f32 %v268, %v274
  %v276 = vsub.f32 %v167, %v275
  %278 = vset.pattern.permute.xlu0 0
  %279 = vperm.xlu0 %278, %v274
  %v280 = vpop.permute.xlu0 %279
  %v282 = vmul.f32 %v260, %v280
  %284 = vset.pattern.permute.xlu0 0
  %285 = vperm.xlu0 %284, %v276
  %v286 = vpop.permute.xlu0 %285
  %v288 = vadd.f32 %v282, %v286
  %v289 = vmax.f32 %v288, 0.0
  %290 = vst [vmem:[%s4] sm:$0xff] %v289
  // Predicated region
  $region18: #{down_forward.1} parent=0 // pred_check
    _
  $region19: #{down_forward.1} parent=0 // pred_check_branch
    %292 = sbr.rel (0) target = $region21
  $region20: #{down_forward.1} parent=0 // pred_region
    _
  $region21: #{down_forward.1} parent=0 // pred_fallthru
    _
  // Predicated region
  $region22: #{down_forward.1} parent=0 // pred_check
    _
  $region23: #{down_forward.1} parent=0 // pred_check_branch
    %294 = sbr.rel (0) target = $region25
  $region24: #{down_forward.1} parent=0 // pred_region
    _
  $region25: #{down_forward.1} parent=0 // pred_fallthru
    _

</llo_original>
